<compile_context>
chip_gen: v7x
topology: tpu7x:2x2x1
jax: 0.10.0
libtpu: 0.0.40
codegen_flags: <defaults>
</compile_context>

<pallas_src>
import math
import functools
import numpy as np
import jax
import jax.numpy as jnp
from jax.experimental import pallas as pl
from jax.experimental.pallas import tpu as pltpu

# ----------------------------- static module config -------------------------
IRREPS_IN = ((4, 0), (4, 1), (4, 2))    # (mul, l), parity = (-1)**l  -> 4x0e+4x1o+4x2e
IRREPS_OUT = ((4, 0), (4, 1), (4, 2))   # 4x0e+4x1o+4x2e


def _dim(irreps):
    return sum(mul * (2 * l + 1) for mul, l in irreps)


def _offsets(irreps):
    offs, o = [], 0
    for mul, l in irreps:
        offs.append(o)
        o += mul * (2 * l + 1)
    return offs


DIM_IN = _dim(IRREPS_IN)       # 36
DIM_OUT = _dim(IRREPS_OUT)     # 36
OUT_PAD = max(128, ((DIM_OUT + 127) // 128) * 128)   # lane-dense output width
IN_OFF = _offsets(IRREPS_IN)
OUT_OFF = _offsets(IRREPS_OUT)


def _instructions():
    """Enumerate instructions exactly as SelfTp.__init__ does."""
    ins = []
    for i1, (_, l1) in enumerate(IRREPS_IN):
        for i2 in range(i1, len(IRREPS_IN)):
            _, l2 = IRREPS_IN[i2]
            for i_out, (_, l3) in enumerate(IRREPS_OUT):
                if abs(l1 - l2) <= l3 <= l1 + l2 and (-1) ** l3 == (-1) ** (l1 + l2):
                    ins.append((i1, i2, i_out))
    return ins


INSTRUCTIONS = _instructions()           # [(i1, i2, i_out), ...]  (8 instructions)


# ------------------- real Wigner-3j (e3nn conventions), pure numpy ----------
def _fact(n):
    return math.factorial(int(round(n)))


def _su2_cg_coeff(j1, m1, j2, m2, j3, m3):
    if m3 != m1 + m2:
        return 0.0
    vmin = int(max(-j1 + j2 + m3, -j1 + m1, 0))
    vmax = int(min(j2 + j3 + m1, j3 - j1 + j2, j3 + m3))
    if vmax < vmin:
        return 0.0
    c = math.sqrt(
        (2 * j3 + 1)
        * _fact(j3 + j1 - j2) * _fact(j3 - j1 + j2) * _fact(j1 + j2 - j3)
        * _fact(j3 + m3) * _fact(j3 - m3)
        / (_fact(j1 + j2 + j3 + 1) * _fact(j1 - m1) * _fact(j1 + m1)
           * _fact(j2 - m2) * _fact(j2 + m2)))
    s = 0.0
    for v in range(vmin, vmax + 1):
        s += ((-1.0) ** (v + j2 + m2)
              * _fact(j2 + j3 + m1 - v) * _fact(j1 - m1 + v)
              / (_fact(v) * _fact(j3 - j1 + j2 - v)
                 * _fact(j3 + m3 - v) * _fact(v + j1 - j2 - m3)))
    return c * s


def _su2_cg(j1, j2, j3):
    mat = np.zeros((2 * j1 + 1, 2 * j2 + 1, 2 * j3 + 1), dtype=np.float64)
    for a, m1 in enumerate(range(-j1, j1 + 1)):
        for b, m2 in enumerate(range(-j2, j2 + 1)):
            m3 = m1 + m2
            if abs(m3) <= j3:
                mat[a, b, m3 + j3] = _su2_cg_coeff(j1, m1, j2, m2, j3, m3)
    return mat


def _real_to_complex(l):
    q = np.zeros((2 * l + 1, 2 * l + 1), dtype=np.complex128)
    for m in range(-l, 0):
        q[l + m, l + abs(m)] = 1.0 / math.sqrt(2.0)
        q[l + m, l - abs(m)] = -1j / math.sqrt(2.0)
    q[l, l] = 1.0
    for m in range(1, l + 1):
        q[l + m, l + abs(m)] = (-1) ** m / math.sqrt(2.0)
        q[l + m, l - abs(m)] = 1j * (-1) ** m / math.sqrt(2.0)
    return ((-1j) ** l) * q


def _wigner_3j(l1, l2, l3):
    q1, q2, q3 = _real_to_complex(l1), _real_to_complex(l2), _real_to_complex(l3)
    c = _su2_cg(l1, l2, l3).astype(np.complex128)
    c = np.einsum('ij,kl,mn,ikn->jlm', q1, q2, np.conj(q3.T), c)
    assert np.max(np.abs(c.imag)) < 1e-5
    c = np.real(c)
    return c / np.linalg.norm(c)


def _norm_coefs():
    """e3nn normalization: irrep_normalization='component', path_normalization='element'."""
    coefs = []
    for (_, _, io) in INSTRUCTIONS:
        l3 = IRREPS_OUT[io][1]
        alpha = float(2 * l3 + 1)
        denom = sum(IRREPS_IN[j1][0] * IRREPS_IN[j2][0]
                    for (j1, j2, jo) in INSTRUCTIONS if jo == io)
        coefs.append(math.sqrt(alpha / denom))
    return coefs


NORM_COEFS = _norm_coefs()
CG_LIST = [_wigner_3j(IRREPS_IN[i1][1], IRREPS_IN[i2][1], IRREPS_OUT[io][1])
           for (i1, i2, io) in INSTRUCTIONS]


# ---------------- static structure of the factorized tensor product ---------
def _build_structure():
    w1_off, w2_off, o1, o2 = [], [], 0, 0
    for (i1, i2, io) in INSTRUCTIONS:
        mul1, mul2, mulo = IRREPS_IN[i1][0], IRREPS_IN[i2][0], IRREPS_OUT[io][0]
        w1_off.append(o1); o1 += mul1 * mulo
        w2_off.append(o2); o2 += mul2 * mulo

    m1_rows, m1_cols, m1_widx = [], [], []
    m2_rows, m2_cols, m2_widx, m2_coef = [], [], [], []
    s_rows, s_cols = [], []
    t = 0
    for idx, (i1, i2, io) in enumerate(INSTRUCTIONS):
        mul1, l1 = IRREPS_IN[i1]
        mul2, l2 = IRREPS_IN[i2]
        mulo, l3 = IRREPS_OUT[io]
        cg = CG_LIST[idx]
        nz = np.argwhere(np.abs(cg) > 1e-9)
        for w in range(mulo):
            for (m1, m2, m3) in nz:
                for u in range(mul1):
                    m1_rows.append(IN_OFF[i1] + u * (2 * l1 + 1) + int(m1))
                    m1_cols.append(t)
                    m1_widx.append(w1_off[idx] + u * mulo + w)
                for v in range(mul2):
                    m2_rows.append(IN_OFF[i2] + v * (2 * l2 + 1) + int(m2))
                    m2_cols.append(t)
                    m2_widx.append(w2_off[idx] + v * mulo + w)
                    m2_coef.append(NORM_COEFS[idx] * float(cg[m1, m2, m3]))
                s_rows.append(t)
                s_cols.append(OUT_OFF[io] + w * (2 * l3 + 1) + int(m3))
                t += 1
    t_pad = max(128, ((t + 127) // 128) * 128)          # lane-dense contraction width
    s_mat = np.zeros((t_pad, OUT_PAD), np.float32)      # lane-dense (128-wide) output
    s_mat[np.array(s_rows), np.array(s_cols)] = 1.0
    return (t_pad,
            np.array(m1_rows), np.array(m1_cols), np.array(m1_widx),
            np.array(m2_rows), np.array(m2_cols), np.array(m2_widx),
            np.array(m2_coef, np.float32), s_mat)


(T_PAD, M1_ROWS, M1_COLS, M1_WIDX,
 M2_ROWS, M2_COLS, M2_WIDX, M2_COEF, S_NP) = _build_structure()


# --------------------------------- kernel -----------------------------------
def self_tp_kernel(x_ref, m12_ref, s_ref, o_ref):
    # x: (tile_n, 36).  Cast to bf16 in-kernel (no extra HBM pass over x).
    x = x_ref[...].astype(jnp.bfloat16)
    # Fused projection GEMM: one RHS pane, one MXU issue/drain.  (tile_n, 2*T_PAD)
    pq = jnp.dot(x, m12_ref[...], preferred_element_type=jnp.float32)
    p = pq[:, :T_PAD]                 # 128-aligned lane slices: free
    q = pq[:, T_PAD:]
    prod = (p * q).astype(jnp.bfloat16)                               # VPU (f32 mul)
    z = jnp.dot(prod, s_ref[...], preferred_element_type=jnp.float32)  # (tile_n, 128)
    o_ref[...] = z.astype(o_ref.dtype)                                 # unmasked lane-dense store


# --------------------------------- wrapper ----------------------------------
def prepare_self_tp_weights(weights1, weights2):
    """Weight preprocessing (analogue of the module's outer product + cat).

    Hoisted out of the per-call hot path; returns the bf16 constants the kernel
    consumes: M12 = [M1 | M2]  (DIM_IN, 2*T_PAD)  and  S  (T_PAD, OUT_PAD).
    """
    w1_flat = jnp.concatenate([jnp.reshape(w.astype(jnp.float32), (-1,)) for w in weights1])
    w2_flat = jnp.concatenate([jnp.reshape(w.astype(jnp.float32), (-1,)) for w in weights2])
    m1 = jnp.zeros((DIM_IN, T_PAD), jnp.float32).at[M1_ROWS, M1_COLS].set(w1_flat[M1_WIDX])
    m2 = jnp.zeros((DIM_IN, T_PAD), jnp.float32).at[M2_ROWS, M2_COLS].set(
        w2_flat[M2_WIDX] * jnp.asarray(M2_COEF))
    m12 = jnp.concatenate([m1, m2], axis=1).astype(jnp.bfloat16)
    s = jnp.asarray(S_NP).astype(jnp.bfloat16)      # 0/1 entries: exact in bf16
    return m12, s


def _pick_tile_n(n):
    """Multiple of 8, capped at 2048 (fits every generation's scoped VMEM incl.
    the (tile_n, 2*T_PAD) f32 intermediate), and small enough that the grid has
    >= ~4 steps so a v7x megacore can shard and pipeline the batch axis."""
    tile = max(128, min(2048, -(-n // 4)))
    return ((tile + 7) // 8) * 8


def self_tp_apply(x, m12, s, *, tile_n=None):
    """x: (N, 36) float, m12/s from prepare_self_tp_weights -> (N, 36) f32."""
    n = x.shape[0]
    assert x.shape == (n, DIM_IN)
    if tile_n is None:
        tile_n = _pick_tile_n(n)
    assert tile_n % 8 == 0
    grid = pl.cdiv(n, tile_n)         # no batch padding: edge block is masked by Pallas

    flops = (2 * n * DIM_IN * (2 * T_PAD)      # x @ M12
             + n * T_PAD                       # p * q
             + 2 * n * T_PAD * OUT_PAD)        # (p*q) @ S
    bytes_accessed = (n * DIM_IN * x.dtype.itemsize
                      + m12.size * m12.dtype.itemsize
                      + s.size * s.dtype.itemsize
                      + n * OUT_PAD * 4)

    out = pl.pallas_call(
        self_tp_kernel,
        out_shape=jax.ShapeDtypeStruct((n, OUT_PAD), jnp.float32),
        grid=(grid,),
        in_specs=[
            pl.BlockSpec((tile_n, DIM_IN), lambda i: (i, 0)),
            pl.BlockSpec((DIM_IN, 2 * T_PAD), lambda i: (0, 0)),
            pl.BlockSpec((T_PAD, OUT_PAD), lambda i: (0, 0)),
        ],
        out_specs=pl.BlockSpec((tile_n, OUT_PAD), lambda i: (i, 0)),
        compiler_params=pltpu.CompilerParams(dimension_semantics=("parallel",)),
        cost_estimate=pl.CostEstimate(flops=flops, transcendentals=0,
                                      bytes_accessed=bytes_accessed),
    )(x, m12, s)
    return out[:, :DIM_OUT]


def self_tp(x, weights1, weights2, *, tile_n=None):
    """Convenience one-shot API (weights preprocessing included)."""
    m12, s = prepare_self_tp_weights(weights1, weights2)
    return self_tp_apply(x, m12, s, tile_n=tile_n)


# ------------------------------ pure-numpy reference ------------------------
def self_tp_ref(x, weights1, weights2):
    """Direct e3nn-style evaluation (uvw paths, rank-1 weights, float64)."""
    x = np.asarray(x, np.float64)
    n = x.shape[0]
    out = np.zeros((n, DIM_OUT), np.float64)
    for idx, (i1, i2, io) in enumerate(INSTRUCTIONS):
        mul1, l1 = IRREPS_IN[i1]
        mul2, l2 = IRREPS_IN[i2]
        mulo, l3 = IRREPS_OUT[io]
        w1 = np.asarray(weights1[idx], np.float64)
        w2 = np.asarray(weights2[idx], np.float64)
        wt = w1[:, None, :] * w2[None, :, :]                 # exactly SelfTp.forward's weight
        x1 = x[:, IN_OFF[i1]:IN_OFF[i1] + mul1 * (2 * l1 + 1)].reshape(n, mul1, 2 * l1 + 1)
        x2 = x[:, IN_OFF[i2]:IN_OFF[i2] + mul2 * (2 * l2 + 1)].reshape(n, mul2, 2 * l2 + 1)
        z = NORM_COEFS[idx] * np.einsum('uvw,ijk,nui,nvj->nwk', wt, CG_LIST[idx], x1, x2)
        sl = slice(OUT_OFF[io], OUT_OFF[io] + mulo * (2 * l3 + 1))
        out[:, sl] += z.reshape(n, mulo * (2 * l3 + 1))
    return out


if __name__ == "__main__":
    key = jax.random.PRNGKey(0)
    n_ins = len(INSTRUCTIONS)
    keys = jax.random.split(key, 2 * n_ins + 1)

    weights1, weights2 = [], []
    for idx, (i1, i2, io) in enumerate(INSTRUCTIONS):
        mul1, mul2, mulo = IRREPS_IN[i1][0], IRREPS_IN[i2][0], IRREPS_OUT[io][0]
        weights1.append(jax.random.normal(keys[2 * idx], (mul1, mulo), jnp.float32))
        weights2.append(jax.random.normal(keys[2 * idx + 1], (mul2, mulo), jnp.float32))

    # Deliberately not a multiple of the tile so the masked partial edge block
    # (no jnp.pad) is exercised.
    N = 777
    x = jax.random.normal(keys[-1], (N, DIM_IN), dtype=jnp.float32)

    # Weight preprocessing hoisted out of the hot path; the apply is jitted.
    m12, s = prepare_self_tp_weights(weights1, weights2)
    apply_fn = jax.jit(functools.partial(self_tp_apply))

    out = jax.block_until_ready(apply_fn(x, m12, s))
    out_np = np.asarray(out, np.float64)

    ref = self_tp_ref(np.asarray(x), [np.asarray(w) for w in weights1],
                      [np.asarray(w) for w in weights2])

    assert out_np.shape == (N, DIM_OUT)
    rel_err = np.linalg.norm(out_np - ref) / np.linalg.norm(ref)
    assert rel_err < 1e-2, float(rel_err)
    assert np.allclose(out_np, ref, rtol=1e-1, atol=1e-1), (
        float(np.max(np.abs(out_np - ref))))

    print("KERNEL_OK")
</pallas_src>

<mosaic_0001>
module attributes {stable_mosaic.version = 11 : i64} {
  func.func @self_tp_kernel(%arg0: i32, %arg1: memref<200x36xf32, #tpu.memory_space<vmem>>, %arg2: memref<36x512xbf16, #tpu.memory_space<vmem>>, %arg3: memref<256x128xbf16, #tpu.memory_space<vmem>>, %arg4: memref<200x128xf32, #tpu.memory_space<vmem>>) attributes {dimension_semantics = [#tpu.dimension_semantics<parallel>], iteration_bounds = array<i64: 4>, scalar_prefetch = 0 : i64, scratch_operands = 0 : i64, tpu.core_type = #tpu.core_type<tc>, window_params = [{transform_indices = @transform_0, window_bounds = array<i64: 200, 36>}, {pipeline_mode = #tpu.pipeline_mode<synchronous>, transform_indices = @transform_1, window_bounds = array<i64: 36, 512>}, {pipeline_mode = #tpu.pipeline_mode<synchronous>, transform_indices = @transform_2, window_bounds = array<i64: 256, 128>}, {transform_indices = @transform_3, window_bounds = array<i64: 200, 128>}]} {
    %c0 = arith.constant 0 : index
    %c0_0 = arith.constant 0 : index
    %0 = vector.load %arg1[%c0, %c0_0] : memref<200x36xf32, #tpu.memory_space<vmem>>, vector<200x36xf32>
    %1 = arith.truncf %0 : vector<200x36xf32> to vector<200x36xbf16>
    %c0_1 = arith.constant 0 : index
    %c0_2 = arith.constant 0 : index
    %2 = vector.load %arg2[%c0_1, %c0_2] : memref<36x512xbf16, #tpu.memory_space<vmem>>, vector<36x512xbf16>
    %cst = arith.constant dense<0.000000e+00> : vector<200x512xf32>
    %3 = tpu.matmul %1, %2, %cst {dimension_numbers = #tpu.dot_dimension_numbers<[1], [0], [0], [1], [0, 0, 1, 1], [], []>} : vector<200x36xbf16>, vector<36x512xbf16>, vector<200x512xf32> -> vector<200x512xf32>
    %4 = vector.extract_strided_slice %3 {offsets = [0, 0], sizes = [200, 256], strides = [1, 1]} : vector<200x512xf32> to vector<200x256xf32>
    %5 = vector.extract_strided_slice %3 {offsets = [0, 256], sizes = [200, 256], strides = [1, 1]} : vector<200x512xf32> to vector<200x256xf32>
    %6 = arith.mulf %4, %5 : vector<200x256xf32>
    %7 = arith.truncf %6 : vector<200x256xf32> to vector<200x256xbf16>
    %c0_3 = arith.constant 0 : index
    %c0_4 = arith.constant 0 : index
    %8 = vector.load %arg3[%c0_3, %c0_4] : memref<256x128xbf16, #tpu.memory_space<vmem>>, vector<256x128xbf16>
    %cst_5 = arith.constant dense<0.000000e+00> : vector<200x128xf32>
    %9 = tpu.matmul %7, %8, %cst_5 {dimension_numbers = #tpu.dot_dimension_numbers<[1], [0], [0], [1], [0, 0, 1, 1], [], []>} : vector<200x256xbf16>, vector<256x128xbf16>, vector<200x128xf32> -> vector<200x128xf32>
    %c0_6 = arith.constant 0 : index
    %c0_7 = arith.constant 0 : index
    %10 = vector.load %arg4[%c0_6, %c0_7] : memref<200x128xf32, #tpu.memory_space<vmem>>, vector<200x128xf32>
    tpu.vector_store %arg4[%c0_6, %c0_7], %9 {strides = array<i32>} : memref<200x128xf32, #tpu.memory_space<vmem>>, vector<200x128xf32>,
    return
  }
  func.func @transform_0(%arg0: i32) -> (i32, i32) {
    %c0_i32 = arith.constant 0 : i32
    %c0_i32_0 = arith.constant 0 : i32
    return %arg0, %c0_i32 : i32, i32
  }
  func.func @transform_1(%arg0: i32) -> (i32, i32) {
    %c0_i32 = arith.constant 0 : i32
    %c0_i32_0 = arith.constant 0 : i32
    %c0_i32_1 = arith.constant 0 : i32
    return %c0_i32, %c0_i32_0 : i32, i32
  }
  func.func @transform_2(%arg0: i32) -> (i32, i32) {
    %c0_i32 = arith.constant 0 : i32
    %c0_i32_0 = arith.constant 0 : i32
    %c0_i32_1 = arith.constant 0 : i32
    return %c0_i32, %c0_i32_0 : i32, i32
  }
  func.func @transform_3(%arg0: i32) -> (i32, i32) {
    %c0_i32 = arith.constant 0 : i32
    %c0_i32_0 = arith.constant 0 : i32
    return %arg0, %c0_i32 : i32, i32
  }
}

</mosaic_0001>

<llo_original>
// kernel: self_tp_apply.1
$region0: #{self_tp_apply.1}
  #allocation0 [shape = 'u32[]', space=smem, size = 0x4, offset = 0x4, fixed_abs, tag = 'smem constant byte address 0x4 - core index']
  #allocation1 [shape = 'u32[144,128]{1,0:T(1,128)}', space=vmem, size = 0x12000, scoped, tag = 'internal scratch']
  %s0 = inlined_call_operand.vmem [shape: f32[777,36], index: 0, kind: input, shape index: {}]
  %s1 = inlined_call_operand.vmem [shape: bf16[36,512], index: 1, kind: input, shape index: {}]
  %s2 = inlined_call_operand.vmem [shape: bf16[256,128], index: 2, kind: input, shape index: {}]
  %s3 = inlined_call_operand.vmem [shape: f32[777,128], index: 3, kind: output, shape index: {}]
  %s4 = sld [smem:[#allocation0]]
  $region93: #{self_tp_apply.1} parent=0
    _
  %s6 = ssub.s32 1, %s4
  %s7 = scalar_select 0, %s6, %s4
  $region1: #{self_tp_apply.1} parent=0
    #allocation2 [shape = 'u8[204800]{0}', space=vmem, size = 0x32000, scoped, tag = 'output window, operand 0']
    loop: start=0, step=1, limit=6
    $region2: #{self_tp_apply.1} parent=1 // loop_pre_header
      _
    $region3: #{self_tp_apply.1} parent=1 // loop_header
      %s9 = sphi 0, %s13
      %p10 = scmp.ge.s32.totalorder %s9, 6
      %s19 = sphi 0, %s21
      %s22 = sphi 0, %s19
      %s23 = sphi 0, %s22
      %s39 = sphi 0, %s23
      %s43 = sphi 0, %s43
      %s45 = sphi 0, %s43
      %s46 = sphi 0, %s45
      %s60 = sphi 0, %s46
      %s64 = sphi 0, %s64
      %s66 = sphi 0, %s64
      %s67 = sphi 0, %s66
      %s81 = sphi 0, %s67
      %s87 = sphi 0, %s89
      %s90 = sphi 0, %s87
      %s91 = sphi 0, %s90
      %s107 = sphi 0, %s91
    $region4: #{self_tp_apply.1} parent=1 // loop_header_branch
      %12 = sbr.rel (%p10) target = $region8
    $region5: #{self_tp_apply.1} parent=1 // loop_body
      %s14 = ssub.s32 %s9, 1
      %s15 = ssub.s32 %s9, 2
      %s16 = sadd.s32 %s9, 1
      %s17 = ssub.s32 %s9, %s16
      %p18 = scmp.eq.s32.totalorder %s17, 0
      %s20 = sadd.s32 %s19, 1
      %s21 = scalar_select %p18, %s19, %s20
      %p24 = pneg %p18
      %p25 = scmp.eq.s32.totalorder %s9, 3
      %p26 = por %p24, %p25
      %p27 = scmp.ne.s32.totalorder %s19, %s22
      %p28 = scmp.eq.s32.totalorder %s9, 0
      %p29 = por %p27, %p28
      %p30 = scmp.ne.s32.totalorder %s19, %s22
      %p31 = scmp.eq.s32.totalorder %s14, 3
      %p32 = por %p30, %p31
      %p33 = scmp.ne.s32.totalorder %s22, %s23
      %p34 = scmp.eq.s32.totalorder %s14, 0
      %p35 = por %p33, %p34
      %p36 = scmp.ne.s32.totalorder %s22, %s23
      %p37 = scmp.eq.s32.totalorder %s15, 3
      %p38 = por %p36, %p37
      %p40 = scmp.ne.s32.totalorder %s23, %s39
      %p41 = scmp.eq.s32.totalorder %s15, 0
      %p42 = por %p40, %p41
      %s44 = sadd.s32 %s43, 1
      %p47 = scmp.eq.s32.totalorder %s9, 3
      %p48 = scmp.ne.s32.totalorder %s43, %s45
      %p49 = scmp.eq.s32.totalorder %s9, 0
      %p50 = por %p48, %p49
      %p51 = scmp.ne.s32.totalorder %s43, %s45
      %p52 = scmp.eq.s32.totalorder %s14, 3
      %p53 = por %p51, %p52
      %p54 = scmp.ne.s32.totalorder %s45, %s46
      %p55 = scmp.eq.s32.totalorder %s14, 0
      %p56 = por %p54, %p55
      %p57 = scmp.ne.s32.totalorder %s45, %s46
      %p58 = scmp.eq.s32.totalorder %s15, 3
      %p59 = por %p57, %p58
      %p61 = scmp.ne.s32.totalorder %s46, %s60
      %p62 = scmp.eq.s32.totalorder %s15, 0
      %p63 = por %p61, %p62
      %s65 = sadd.s32 %s64, 1
      %p68 = scmp.eq.s32.totalorder %s9, 3
      %p69 = scmp.ne.s32.totalorder %s64, %s66
      %p70 = scmp.eq.s32.totalorder %s9, 0
      %p71 = por %p69, %p70
      %p72 = scmp.ne.s32.totalorder %s64, %s66
      %p73 = scmp.eq.s32.totalorder %s14, 3
      %p74 = por %p72, %p73
      %p75 = scmp.ne.s32.totalorder %s66, %s67
      %p76 = scmp.eq.s32.totalorder %s14, 0
      %p77 = por %p75, %p76
      %p78 = scmp.ne.s32.totalorder %s66, %s67
      %p79 = scmp.eq.s32.totalorder %s15, 3
      %p80 = por %p78, %p79
      %p82 = scmp.ne.s32.totalorder %s67, %s81
      %p83 = scmp.eq.s32.totalorder %s15, 0
      %p84 = por %p82, %p83
      %s85 = ssub.s32 %s9, %s16
      %p86 = scmp.eq.s32.totalorder %s85, 0
      %s88 = sadd.s32 %s87, 1
      %s89 = scalar_select %p86, %s87, %s88
      %p92 = pneg %p86
      %p93 = scmp.eq.s32.totalorder %s9, 3
      %p94 = por %p92, %p93
      %p95 = scmp.ne.s32.totalorder %s87, %s90
      %p96 = scmp.eq.s32.totalorder %s9, 0
      %p97 = por %p95, %p96
      %p98 = scmp.ne.s32.totalorder %s87, %s90
      %p99 = scmp.eq.s32.totalorder %s14, 3
      %p100 = por %p98, %p99
      %p101 = scmp.ne.s32.totalorder %s90, %s91
      %p102 = scmp.eq.s32.totalorder %s14, 0
      %p103 = por %p101, %p102
      %p104 = scmp.ne.s32.totalorder %s90, %s91
      %p105 = scmp.eq.s32.totalorder %s15, 3
      %p106 = por %p104, %p105
      %p108 = scmp.ne.s32.totalorder %s91, %s107
      %p109 = scmp.eq.s32.totalorder %s15, 0
      %p110 = por %p108, %p109
      %p111 = scmp.le.s32.totalorder 1, %s9
      %p112 = scmp.lt.s32.totalorder %s9, 5
      %p113 = pnand %p111, %p112
      %p114 = pneg %p113
      // Predicated region
      $region9: #{self_tp_apply.1} parent=5 // pred_check
        _
      $region10: #{self_tp_apply.1} parent=5 // pred_check_branch
        %116 = sbr.rel (%p113) target = $region12
      $region11: #{self_tp_apply.1} parent=5 // pred_region
        %s117 = ssub.s32 %s9, 1
        // Predicated region
        $region13: #{self_tp_apply.1} parent=11 // pred_check
          %p118 = pneg %p56
        $region14: #{self_tp_apply.1} parent=11 // pred_check_branch
          %120 = sbr.rel (%p118) target = $region16
        $region15: #{self_tp_apply.1} parent=11 // pred_region
          _
        $region16: #{self_tp_apply.1} parent=11 // pred_fallthru
          _
        // Predicated region
        $region17: #{self_tp_apply.1} parent=11 // pred_check
          %p121 = pneg %p77
        $region18: #{self_tp_apply.1} parent=11 // pred_check_branch
          %123 = sbr.rel (%p121) target = $region20
        $region19: #{self_tp_apply.1} parent=11 // pred_region
          _
        $region20: #{self_tp_apply.1} parent=11 // pred_fallthru
          _
      $region12: #{self_tp_apply.1} parent=5 // pred_fallthru
        _
      %p124 = scmp.lt.s32.totalorder %s9, 4
      // Predicated region
      $region21: #{self_tp_apply.1} parent=5 // pred_check
        %p125 = pneg %p124
      $region22: #{self_tp_apply.1} parent=5 // pred_check_branch
        %127 = sbr.rel (%p125) target = $region24
      $region23: #{self_tp_apply.1} parent=5 // pred_region
        // Predicated region
        $region25: #{self_tp_apply.1} parent=23 // pred_check
          %p128 = pneg %p29
        $region26: #{self_tp_apply.1} parent=23 // pred_check_branch
          %130 = sbr.rel (%p128) target = $region28
        $region27: #{self_tp_apply.1} parent=23 // pred_region
          %s131 = smul.u32 25, %s9
          %s132 = ssub.s32 98, %s131
          %p133 = scmp.lt.s32.totalorder %s132, 25
          %s134 = scalar_select %p133, %s132, 25
          %s135 = smul.u32 128, %s134
          %p136 = scmp.lt.s32.totalorder %s131, 97
          %s137 = scalar_select %p136, %s131, 97
          %s138 = smul.addr %s137, 8
          %s139 = scalar_lea.vmem %s0, %s138
          %s140 = smul.u32 25, %s9
          %s141 = ssub.s32 98, %s140
          %p142 = scmp.lt.s32.totalorder %s141, 25
          %s143 = scalar_select %p142, %s141, 25
          %s144 = smul.u32 128, %s143
        $region28: #{self_tp_apply.1} parent=23 // pred_fallthru
          _
      $region24: #{self_tp_apply.1} parent=5 // pred_fallthru
        _
      %p145 = scmp.le.s32.totalorder 1, %s9
      %p146 = scmp.lt.s32.totalorder %s9, 5
      %p147 = pnand %p145, %p146
      %p148 = pneg %p147
      // Predicated region
      $region29: #{self_tp_apply.1} parent=5 // pred_check
        _
      $region30: #{self_tp_apply.1} parent=5 // pred_check_branch
        %150 = sbr.rel (%p147) target = $region32
      $region31: #{self_tp_apply.1} parent=5 // pred_region
        %s151 = ssub.s32 %s9, 1
        %s152 = smul.u32 25, %s14
        %s153 = ssub.s32 98, %s152
        %p154 = scmp.lt.s32.totalorder %s153, 25
        %s155 = scalar_select %p154, %s153, 25
        %s156 = smul.u32 128, %s155
        %p157 = scmp.lt.s32.totalorder %s152, 97
        %s158 = scalar_select %p157, %s152, 97
        %s159 = smul.addr %s158, 8
        %s160 = scalar_lea.vmem %s0, %s159
        %p161 = pneg %p35
        %p162 = pneg %p32
        %p163 = pneg %p56
        %p164 = pneg %p53
        %p165 = pneg %p77
        %p166 = pneg %p74
        %p167 = pneg %p103
        %p168 = pneg %p100
        %s169 = sand.u32 %s90, 1
        %s170 = sand.u32 %s90, 1
        %s171 = smul.addr %s170, 200
        %s172 = scalar_lea.vmem [#allocation2], %s171
        %s173 = smul.u32 25, %s14
        %s174 = ssub.s32 98, %s173
        %p175 = scmp.lt.s32.totalorder %s174, 25
        %s176 = scalar_select %p175, %s174, 25
        %s177 = smul.u32 128, %s176
        %p178 = scmp.lt.s32.totalorder %s173, 97
        %s179 = scalar_select %p178, %s173, 97
        %s180 = smul.addr %s179, 8
        %s181 = scalar_lea.vmem %s0, %s180
        %s182 = smul.u32 25, %s14
        %s183 = ssub.s32 98, %s182
        %p184 = scmp.lt.s32.totalorder %s183, 25
        %s185 = scalar_select %p184, %s183, 25
        %s186 = smul.u32 128, %s185
        %s187 = smul.u32 25, %s14
        %s188 = ssub.s32 98, %s187
        %p189 = scmp.lt.s32.totalorder %s188, 25
        %s190 = scalar_select %p189, %s188, 25
        %s191 = smul.u32 128, %s190
        %v193 = vld [vmem:[%s181] sm:$0xff]
        %v194 = vld [vmem:[%s181 + $0x8] sm:$0xff]
        %v195 = vld [vmem:[%s181 + $0x10] sm:$0xff]
        %v196 = vld [vmem:[%s181 + $0x18] sm:$0xff]
        %v197 = vld [vmem:[%s181 + $0x20] sm:$0xff]
        %v198 = vld [vmem:[%s181 + $0x28] sm:$0xff]
        %v199 = vld [vmem:[%s181 + $0x30] sm:$0xff]
        %v200 = vld [vmem:[%s181 + $0x38] sm:$0xff]
        %v201 = vld [vmem:[%s181 + $0x40] sm:$0xff]
        %v202 = vld [vmem:[%s181 + $0x48] sm:$0xff]
        %v203 = vld [vmem:[%s181 + $0x50] sm:$0xff]
        %v204 = vld [vmem:[%s181 + $0x58] sm:$0xff]
        %v205 = vld [vmem:[%s181 + $0x60] sm:$0xff]
        %v206 = vld [vmem:[%s181 + $0x68] sm:$0xff]
        %v207 = vld [vmem:[%s181 + $0x70] sm:$0xff]
        %v208 = vld [vmem:[%s181 + $0x78] sm:$0xff]
        %v209 = vld [vmem:[%s181 + $0x80] sm:$0xff]
        %v210 = vld [vmem:[%s181 + $0x88] sm:$0xff]
        %v211 = vld [vmem:[%s181 + $0x90] sm:$0xff]
        %v212 = vld [vmem:[%s181 + $0x98] sm:$0xff]
        %v213 = vld [vmem:[%s181 + $0xa0] sm:$0xff]
        %v214 = vld [vmem:[%s181 + $0xa8] sm:$0xff]
        %v215 = vld [vmem:[%s181 + $0xb0] sm:$0xff]
        %v216 = vld [vmem:[%s181 + $0xb8] sm:$0xff]
        %v217 = vld [vmem:[%s181 + $0xc0] sm:$0xff]
        %v218 = vpack.c.bf16 %v194, %v193
        %v219 = vpack.c.bf16 %v196, %v195
        %v220 = vpack.c.bf16 %v198, %v197
        %v221 = vpack.c.bf16 %v200, %v199
        %v222 = vpack.c.bf16 %v202, %v201
        %v223 = vpack.c.bf16 %v204, %v203
        %v224 = vpack.c.bf16 %v206, %v205
        %v225 = vpack.c.bf16 %v208, %v207
        %v226 = vpack.c.bf16 %v210, %v209
        %v227 = vpack.c.bf16 %v212, %v211
        %v228 = vpack.c.bf16 %v214, %v213
        %v229 = vpack.c.bf16 %v216, %v215
        %v230 = vpack.c.bf16 %v217, %v217
        %v231 = vld [vmem:[%s1] sm:$0xff]
        %v232 = vld [vmem:[%s1 + $0x8] sm:$0xff]
        %v233 = vld [vmem:[%s1 + $0x10] sm:$0xff]
        %v234 = vld [vmem:[%s1 + $0x18] sm:$0xff]
        %v235 = vld [vmem:[%s1 + $0x20] sm:$0xff]
        %v236 = vld [vmem:[%s1 + $0x28] sm:$0xff]
        %v237 = vld [vmem:[%s1 + $0x30] sm:$0xff]
        %v238 = vld [vmem:[%s1 + $0x38] sm:$0xff]
        %v239 = vld [vmem:[%s1 + $0x40] sm:$0x33]
        %v240 = vld [vmem:[%s1 + $0x48] sm:$0x33]
        %v251 = vunpack.c.l.b16 %v231
        %v252 = vunpack.c.h.b16 %v231
        %v253 = vunpack.c.l.b16 %v232
        %v254 = vunpack.c.h.b16 %v232
        %v255 = vunpack.c.l.b16 %v233
        %v256 = vunpack.c.h.b16 %v233
        %v257 = vunpack.c.l.b16 %v234
        %v258 = vunpack.c.h.b16 %v234
        %v259 = vunpack.c.l.b16 %v235
        %v260 = vunpack.c.h.b16 %v235
        %v261 = vunpack.c.l.b16 %v236
        %v262 = vunpack.c.h.b16 %v236
        %v263 = vunpack.c.l.b16 %v237
        %v264 = vunpack.c.h.b16 %v237
        %v265 = vunpack.c.l.b16 %v238
        %v266 = vunpack.c.h.b16 %v238
        %v267 = vunpack.c.l.b16 %v239
        %v268 = vunpack.c.h.b16 %v239
        %v269 = vunpack.c.l.b16 %v240
        %v270 = vunpack.c.h.b16 %v240
        %v271 = vpack.c.b16 %v255, %v251
        %v272 = vpack.c.b16 %v256, %v252
        %v273 = vpack.c.b16 %v257, %v253
        %v274 = vpack.c.b16 %v258, %v254
        %v275 = vpack.c.b16 %v263, %v259
        %v276 = vpack.c.b16 %v264, %v260
        %v277 = vpack.c.b16 %v265, %v261
        %v278 = vpack.c.b16 %v266, %v262
        %v279 = vpack.c.b16 %v267, %v267
        %v280 = vpack.c.b16 %v268, %v268
        %v281 = vpack.c.b16 %v269, %v269
        %v282 = vpack.c.b16 %v270, %v270
        %vm291 = vcmask 293888
        %v293 = vsel %vm291, %v218, 0
        %v296 = vsel %vm291, %v219, 0
        %v299 = vsel %vm291, %v220, 0
        %v302 = vsel %vm291, %v221, 0
        %v305 = vsel %vm291, %v222, 0
        %v308 = vsel %vm291, %v223, 0
        %v311 = vsel %vm291, %v224, 0
        %v314 = vsel %vm291, %v225, 0
        %v317 = vsel %vm291, %v226, 0
        %v320 = vsel %vm291, %v227, 0
        %v323 = vsel %vm291, %v228, 0
        %v326 = vsel %vm291, %v229, 0
        %v329 = vsel %vm291, %v230, 0
        %vm331 = vcmask 1041408
        %v333 = vsel %vm331, %v279, 0
        %v336 = vsel %vm331, %v280, 0
        %v339 = vsel %vm331, %v281, 0
        %v342 = vsel %vm331, %v282, 0
        %344 = vmatprep.subr.bf16.mxu0 %v272
        %345 = vmatpush1.bf16.msra.mxu0 %v271
        %346 = vmatprep.subr.bf16.mxu0 %v276
        %347 = vmatpush1.bf16.msra.mxu0 %v275
        %348 = vmatprep.subr.bf16.mxu0 %v336
        %349 = vmatpush1.bf16.msra.mxu0 %v333
        %350 = vmatprep.subr.bf16.mxu0 0
        %351 = vmatpush1.bf16.msra.mxu0 0
        %352 = vmatprep.subr.bf16.mxu0 0
        %353 = vmatpush1.bf16.msra.mxu0 0
        %354 = vmatprep.subr.bf16.mxu0 0
        %355 = vmatpush1.bf16.msra.mxu0 0
        %356 = vmatprep.subr.bf16.mxu0 0
        %357 = vmatpush1.bf16.msra.mxu0 0
        %358 = vmatprep.subr.bf16.mxu0 0
        %359 = vmatpush1.bf16.msra.mxu0 0
        %360 = vmatprep.subr.bf16.mxu0 0
        %361 = vmatpush1.bf16.msra.mxu0 0
        %362 = vmatprep.subr.bf16.mxu0 0
        %363 = vmatpush1.bf16.msra.mxu0 0
        %364 = vmatprep.subr.bf16.mxu0 0
        %365 = vmatpush1.bf16.msra.mxu0 0
        %366 = vmatprep.subr.bf16.mxu0 0
        %367 = vmatpush1.bf16.msra.mxu0 0
        %368 = vmatprep.subr.bf16.mxu0 0
        %369 = vmatpush1.bf16.msra.mxu0 0
        %370 = vmatprep.subr.bf16.mxu0 0
        %371 = vmatpush1.bf16.msra.mxu0 0
        %372 = vmatprep.subr.bf16.mxu0 0
        %373 = vmatpush1.bf16.msra.mxu0 0
        %374 = vmatprep.subr.bf16.mxu0 0
        %375 = vmatpush1.bf16.msra.mxu0 0
        %376 = vmatprep.mubr.bf16.mxu0 0
        %377 = vmatmul.mubr.bf16.gmra.mrb[0].mxu0 %v293
        %v378 = vpop.f32.mrb[0].mxu0
        %v379 = vadd.f32 0.0, %v378
        %v380 = vpop.f32.mrb[0].mxu0
        %v381 = vadd.f32 0.0, %v380
        %v382 = vpop.f32.mrb[0].mxu0
        %v383 = vadd.f32 0.0, %v382
        %v384 = vpop.f32.mrb[0].mxu0
        %v385 = vadd.f32 0.0, %v384
        %386 = vmatprep.mubr.bf16.mxu0 0
        %387 = vmatmul.mubr.bf16.gmra.mrb[0].mxu0 %v296
        %v388 = vpop.f32.mrb[0].mxu0
        %v389 = vadd.f32 0.0, %v388
        %v390 = vpop.f32.mrb[0].mxu0
        %v391 = vadd.f32 0.0, %v390
        %v392 = vpop.f32.mrb[0].mxu0
        %v393 = vadd.f32 0.0, %v392
        %v394 = vpop.f32.mrb[0].mxu0
        %v395 = vadd.f32 0.0, %v394
        %396 = vmatprep.mubr.bf16.mxu0 0
        %397 = vmatmul.mubr.bf16.gmra.mrb[0].mxu0 %v299
        %v398 = vpop.f32.mrb[0].mxu0
        %v399 = vadd.f32 0.0, %v398
        %v400 = vpop.f32.mrb[0].mxu0
        %v401 = vadd.f32 0.0, %v400
        %v402 = vpop.f32.mrb[0].mxu0
        %v403 = vadd.f32 0.0, %v402
        %v404 = vpop.f32.mrb[0].mxu0
        %v405 = vadd.f32 0.0, %v404
        %406 = vmatprep.mubr.bf16.mxu0 0
        %407 = vmatmul.mubr.bf16.gmra.mrb[0].mxu0 %v302
        %v408 = vpop.f32.mrb[0].mxu0
        %v409 = vadd.f32 0.0, %v408
        %v410 = vpop.f32.mrb[0].mxu0
        %v411 = vadd.f32 0.0, %v410
        %v412 = vpop.f32.mrb[0].mxu0
        %v413 = vadd.f32 0.0, %v412
        %v414 = vpop.f32.mrb[0].mxu0
        %v415 = vadd.f32 0.0, %v414
        %416 = vmatprep.mubr.bf16.mxu0 0
        %417 = vmatmul.mubr.bf16.gmra.mrb[0].mxu0 %v305
        %v418 = vpop.f32.mrb[0].mxu0
        %v419 = vadd.f32 0.0, %v418
        %v420 = vpop.f32.mrb[0].mxu0
        %v421 = vadd.f32 0.0, %v420
        %v422 = vpop.f32.mrb[0].mxu0
        %v423 = vadd.f32 0.0, %v422
        %v424 = vpop.f32.mrb[0].mxu0
        %v425 = vadd.f32 0.0, %v424
        %426 = vmatprep.mubr.bf16.mxu0 0
        %427 = vmatmul.mubr.bf16.gmra.mrb[0].mxu0 %v308
        %v428 = vpop.f32.mrb[0].mxu0
        %v429 = vadd.f32 0.0, %v428
        %v430 = vpop.f32.mrb[0].mxu0
        %v431 = vadd.f32 0.0, %v430
        %v432 = vpop.f32.mrb[0].mxu0
        %v433 = vadd.f32 0.0, %v432
        %v434 = vpop.f32.mrb[0].mxu0
        %v435 = vadd.f32 0.0, %v434
        %436 = vmatprep.mubr.bf16.mxu0 0
        %437 = vmatmul.mubr.bf16.gmra.mrb[0].mxu0 %v311
        %v438 = vpop.f32.mrb[0].mxu0
        %v439 = vadd.f32 0.0, %v438
        %v440 = vpop.f32.mrb[0].mxu0
        %v441 = vadd.f32 0.0, %v440
        %v442 = vpop.f32.mrb[0].mxu0
        %v443 = vadd.f32 0.0, %v442
        %v444 = vpop.f32.mrb[0].mxu0
        %v445 = vadd.f32 0.0, %v444
        %446 = vmatprep.mubr.bf16.mxu0 0
        %447 = vmatmul.mubr.bf16.gmra.mrb[0].mxu0 %v314
        %v448 = vpop.f32.mrb[0].mxu0
        %v449 = vadd.f32 0.0, %v448
        %v450 = vpop.f32.mrb[0].mxu0
        %v451 = vadd.f32 0.0, %v450
        %v452 = vpop.f32.mrb[0].mxu0
        %v453 = vadd.f32 0.0, %v452
        %v454 = vpop.f32.mrb[0].mxu0
        %v455 = vadd.f32 0.0, %v454
        %456 = vmatprep.mubr.bf16.mxu0 0
        %457 = vmatmul.mubr.bf16.gmra.mrb[0].mxu0 %v317
        %v458 = vpop.f32.mrb[0].mxu0
        %v459 = vadd.f32 0.0, %v458
        %v460 = vpop.f32.mrb[0].mxu0
        %v461 = vadd.f32 0.0, %v460
        %v462 = vpop.f32.mrb[0].mxu0
        %v463 = vadd.f32 0.0, %v462
        %v464 = vpop.f32.mrb[0].mxu0
        %v465 = vadd.f32 0.0, %v464
        %466 = vmatprep.mubr.bf16.mxu0 0
        %467 = vmatmul.mubr.bf16.gmra.mrb[0].mxu0 %v320
        %v468 = vpop.f32.mrb[0].mxu0
        %v469 = vadd.f32 0.0, %v468
        %v470 = vpop.f32.mrb[0].mxu0
        %v471 = vadd.f32 0.0, %v470
        %v472 = vpop.f32.mrb[0].mxu0
        %v473 = vadd.f32 0.0, %v472
        %v474 = vpop.f32.mrb[0].mxu0
        %v475 = vadd.f32 0.0, %v474
        %476 = vmatprep.mubr.bf16.mxu0 0
        %477 = vmatmul.mubr.bf16.gmra.mrb[0].mxu0 %v323
        %v478 = vpop.f32.mrb[0].mxu0
        %v479 = vadd.f32 0.0, %v478
        %v480 = vpop.f32.mrb[0].mxu0
        %v481 = vadd.f32 0.0, %v480
        %v482 = vpop.f32.mrb[0].mxu0
        %v483 = vadd.f32 0.0, %v482
        %v484 = vpop.f32.mrb[0].mxu0
        %v485 = vadd.f32 0.0, %v484
        %486 = vmatprep.mubr.bf16.mxu0 0
        %487 = vmatmul.mubr.bf16.gmra.mrb[0].mxu0 %v326
        %v488 = vpop.f32.mrb[0].mxu0
        %v489 = vadd.f32 0.0, %v488
        %v490 = vpop.f32.mrb[0].mxu0
        %v491 = vadd.f32 0.0, %v490
        %v492 = vpop.f32.mrb[0].mxu0
        %v493 = vadd.f32 0.0, %v492
        %v494 = vpop.f32.mrb[0].mxu0
        %v495 = vadd.f32 0.0, %v494
        %496 = vmatprep.mubr.bf16.mxu0 0
        %497 = vmatmul.mubr.bf16.gmra.mrb[0].mxu0 %v329
        %v498 = vpop.f32.mrb[0].mxu0
        %v499 = vadd.f32 0.0, %v498
        %v500 = vpop.f32.mrb[0].mxu0
        %v501 = vadd.f32 0.0, %v500
        %v502 = vpop.f32.mrb[0].mxu0
        %v503 = vpop.f32.mrb[0].mxu0
        %504 = vdwg.mxu0
        %505 = vmatprep.subr.bf16.mxu0 %v274
        %506 = vmatpush1.bf16.msra.mxu0 %v273
        %507 = vmatprep.subr.bf16.mxu0 %v278
        %508 = vmatpush1.bf16.msra.mxu0 %v277
        %509 = vmatprep.subr.bf16.mxu0 %v342
        %510 = vmatpush1.bf16.msra.mxu0 %v339
        %511 = vmatprep.subr.bf16.mxu0 0
        %512 = vmatpush1.bf16.msra.mxu0 0
        %513 = vmatprep.subr.bf16.mxu0 0
        %514 = vmatpush1.bf16.msra.mxu0 0
        %515 = vmatprep.subr.bf16.mxu0 0
        %516 = vmatpush1.bf16.msra.mxu0 0
        %517 = vmatprep.subr.bf16.mxu0 0
        %518 = vmatpush1.bf16.msra.mxu0 0
        %519 = vmatprep.subr.bf16.mxu0 0
        %520 = vmatpush1.bf16.msra.mxu0 0
        %521 = vmatprep.subr.bf16.mxu0 0
        %522 = vmatpush1.bf16.msra.mxu0 0
        %523 = vmatprep.subr.bf16.mxu0 0
        %524 = vmatpush1.bf16.msra.mxu0 0
        %525 = vmatprep.subr.bf16.mxu0 0
        %526 = vmatpush1.bf16.msra.mxu0 0
        %527 = vmatprep.subr.bf16.mxu0 0
        %528 = vmatpush1.bf16.msra.mxu0 0
        %529 = vmatprep.subr.bf16.mxu0 0
        %530 = vmatpush1.bf16.msra.mxu0 0
        %531 = vmatprep.subr.bf16.mxu0 0
        %532 = vmatpush1.bf16.msra.mxu0 0
        %533 = vmatprep.subr.bf16.mxu0 0
        %534 = vmatpush1.bf16.msra.mxu0 0
        %535 = vmatprep.subr.bf16.mxu0 0
        %536 = vmatpush1.bf16.msra.mxu0 0
        %537 = vmatprep.mubr.bf16.mxu0 0
        %538 = vmatmul.mubr.bf16.gmra.mrb[0].mxu0 %v293
        %v539 = vpop.f32.mrb[0].mxu0
        %v540 = vadd.f32 0.0, %v539
        %v541 = vpop.f32.mrb[0].mxu0
        %v542 = vadd.f32 0.0, %v541
        %v543 = vpop.f32.mrb[0].mxu0
        %v544 = vadd.f32 0.0, %v543
        %v545 = vpop.f32.mrb[0].mxu0
        %v546 = vadd.f32 0.0, %v545
        %547 = vmatprep.mubr.bf16.mxu0 0
        %548 = vmatmul.mubr.bf16.gmra.mrb[0].mxu0 %v296
        %v549 = vpop.f32.mrb[0].mxu0
        %v550 = vadd.f32 0.0, %v549
        %v551 = vpop.f32.mrb[0].mxu0
        %v552 = vadd.f32 0.0, %v551
        %v553 = vpop.f32.mrb[0].mxu0
        %v554 = vadd.f32 0.0, %v553
        %v555 = vpop.f32.mrb[0].mxu0
        %v556 = vadd.f32 0.0, %v555
        %557 = vmatprep.mubr.bf16.mxu0 0
        %558 = vmatmul.mubr.bf16.gmra.mrb[0].mxu0 %v299
        %v559 = vpop.f32.mrb[0].mxu0
        %v560 = vadd.f32 0.0, %v559
        %v561 = vpop.f32.mrb[0].mxu0
        %v562 = vadd.f32 0.0, %v561
        %v563 = vpop.f32.mrb[0].mxu0
        %v564 = vadd.f32 0.0, %v563
        %v565 = vpop.f32.mrb[0].mxu0
        %v566 = vadd.f32 0.0, %v565
        %567 = vmatprep.mubr.bf16.mxu0 0
        %568 = vmatmul.mubr.bf16.gmra.mrb[0].mxu0 %v302
        %v569 = vpop.f32.mrb[0].mxu0
        %v570 = vadd.f32 0.0, %v569
        %v571 = vpop.f32.mrb[0].mxu0
        %v572 = vadd.f32 0.0, %v571
        %v573 = vpop.f32.mrb[0].mxu0
        %v574 = vadd.f32 0.0, %v573
        %v575 = vpop.f32.mrb[0].mxu0
        %v576 = vadd.f32 0.0, %v575
        %577 = vmatprep.mubr.bf16.mxu0 0
        %578 = vmatmul.mubr.bf16.gmra.mrb[0].mxu0 %v305
        %v579 = vpop.f32.mrb[0].mxu0
        %v580 = vadd.f32 0.0, %v579
        %v581 = vpop.f32.mrb[0].mxu0
        %v582 = vadd.f32 0.0, %v581
        %v583 = vpop.f32.mrb[0].mxu0
        %v584 = vadd.f32 0.0, %v583
        %v585 = vpop.f32.mrb[0].mxu0
        %v586 = vadd.f32 0.0, %v585
        %587 = vmatprep.mubr.bf16.mxu0 0
        %588 = vmatmul.mubr.bf16.gmra.mrb[0].mxu0 %v308
        %v589 = vpop.f32.mrb[0].mxu0
        %v590 = vadd.f32 0.0, %v589
        %v591 = vpop.f32.mrb[0].mxu0
        %v592 = vadd.f32 0.0, %v591
        %v593 = vpop.f32.mrb[0].mxu0
        %v594 = vadd.f32 0.0, %v593
        %v595 = vpop.f32.mrb[0].mxu0
        %v596 = vadd.f32 0.0, %v595
        %597 = vmatprep.mubr.bf16.mxu0 0
        %598 = vmatmul.mubr.bf16.gmra.mrb[0].mxu0 %v311
        %v599 = vpop.f32.mrb[0].mxu0
        %v600 = vadd.f32 0.0, %v599
        %v601 = vpop.f32.mrb[0].mxu0
        %v602 = vadd.f32 0.0, %v601
        %v603 = vpop.f32.mrb[0].mxu0
        %v604 = vadd.f32 0.0, %v603
        %v605 = vpop.f32.mrb[0].mxu0
        %v606 = vadd.f32 0.0, %v605
        %607 = vmatprep.mubr.bf16.mxu0 0
        %608 = vmatmul.mubr.bf16.gmra.mrb[0].mxu0 %v314
        %v609 = vpop.f32.mrb[0].mxu0
        %v610 = vadd.f32 0.0, %v609
        %v611 = vpop.f32.mrb[0].mxu0
        %v612 = vadd.f32 0.0, %v611
        %v613 = vpop.f32.mrb[0].mxu0
        %v614 = vadd.f32 0.0, %v613
        %v615 = vpop.f32.mrb[0].mxu0
        %v616 = vadd.f32 0.0, %v615
        %617 = vmatprep.mubr.bf16.mxu0 0
        %618 = vmatmul.mubr.bf16.gmra.mrb[0].mxu0 %v317
        %v619 = vpop.f32.mrb[0].mxu0
        %v620 = vadd.f32 0.0, %v619
        %v621 = vpop.f32.mrb[0].mxu0
        %v622 = vadd.f32 0.0, %v621
        %v623 = vpop.f32.mrb[0].mxu0
        %v624 = vadd.f32 0.0, %v623
        %v625 = vpop.f32.mrb[0].mxu0
        %v626 = vadd.f32 0.0, %v625
        %627 = vmatprep.mubr.bf16.mxu0 0
        %628 = vmatmul.mubr.bf16.gmra.mrb[0].mxu0 %v320
        %v629 = vpop.f32.mrb[0].mxu0
        %v630 = vadd.f32 0.0, %v629
        %v631 = vpop.f32.mrb[0].mxu0
        %v632 = vadd.f32 0.0, %v631
        %v633 = vpop.f32.mrb[0].mxu0
        %v634 = vadd.f32 0.0, %v633
        %v635 = vpop.f32.mrb[0].mxu0
        %v636 = vadd.f32 0.0, %v635
        %637 = vmatprep.mubr.bf16.mxu0 0
        %638 = vmatmul.mubr.bf16.gmra.mrb[0].mxu0 %v323
        %v639 = vpop.f32.mrb[0].mxu0
        %v640 = vadd.f32 0.0, %v639
        %v641 = vpop.f32.mrb[0].mxu0
        %v642 = vadd.f32 0.0, %v641
        %v643 = vpop.f32.mrb[0].mxu0
        %v644 = vadd.f32 0.0, %v643
        %v645 = vpop.f32.mrb[0].mxu0
        %v646 = vadd.f32 0.0, %v645
        %647 = vmatprep.mubr.bf16.mxu0 0
        %648 = vmatmul.mubr.bf16.gmra.mrb[0].mxu0 %v326
        %v649 = vpop.f32.mrb[0].mxu0
        %v650 = vadd.f32 0.0, %v649
        %v651 = vpop.f32.mrb[0].mxu0
        %v652 = vadd.f32 0.0, %v651
        %v653 = vpop.f32.mrb[0].mxu0
        %v654 = vadd.f32 0.0, %v653
        %v655 = vpop.f32.mrb[0].mxu0
        %v656 = vadd.f32 0.0, %v655
        %657 = vmatprep.mubr.bf16.mxu0 0
        %658 = vmatmul.mubr.bf16.gmra.mrb[0].mxu0 %v329
        %v659 = vpop.f32.mrb[0].mxu0
        %v660 = vadd.f32 0.0, %v659
        %v661 = vpop.f32.mrb[0].mxu0
        %v662 = vadd.f32 0.0, %v661
        %v663 = vpop.f32.mrb[0].mxu0
        %v664 = vpop.f32.mrb[0].mxu0
        %665 = vdwg.mxu0
        %v666 = vmul.f32 %v379, %v540
        %v667 = vmul.f32 %v381, %v542
        %v668 = vmul.f32 %v383, %v544
        %v669 = vmul.f32 %v385, %v546
        %v670 = vmul.f32 %v389, %v550
        %v671 = vmul.f32 %v391, %v552
        %v672 = vmul.f32 %v393, %v554
        %v673 = vmul.f32 %v395, %v556
        %v674 = vmul.f32 %v399, %v560
        %v675 = vmul.f32 %v401, %v562
        %v676 = vmul.f32 %v403, %v564
        %v677 = vmul.f32 %v405, %v566
        %v678 = vmul.f32 %v409, %v570
        %v679 = vmul.f32 %v411, %v572
        %v680 = vmul.f32 %v413, %v574
        %v681 = vmul.f32 %v415, %v576
        %v682 = vmul.f32 %v419, %v580
        %v683 = vmul.f32 %v421, %v582
        %v684 = vmul.f32 %v423, %v584
        %v685 = vmul.f32 %v425, %v586
        %v686 = vmul.f32 %v429, %v590
        %v687 = vmul.f32 %v431, %v592
        %v688 = vmul.f32 %v433, %v594
        %v689 = vmul.f32 %v435, %v596
        %v690 = vmul.f32 %v439, %v600
        %v691 = vmul.f32 %v441, %v602
        %v692 = vmul.f32 %v443, %v604
        %v693 = vmul.f32 %v445, %v606
        %v694 = vmul.f32 %v449, %v610
        %v695 = vmul.f32 %v451, %v612
        %v696 = vmul.f32 %v453, %v614
        %v697 = vmul.f32 %v455, %v616
        %v698 = vmul.f32 %v459, %v620
        %v699 = vmul.f32 %v461, %v622
        %v700 = vmul.f32 %v463, %v624
        %v701 = vmul.f32 %v465, %v626
        %v702 = vmul.f32 %v469, %v630
        %v703 = vmul.f32 %v471, %v632
        %v704 = vmul.f32 %v473, %v634
        %v705 = vmul.f32 %v475, %v636
        %v706 = vmul.f32 %v479, %v640
        %v707 = vmul.f32 %v481, %v642
        %v708 = vmul.f32 %v483, %v644
        %v709 = vmul.f32 %v485, %v646
        %v710 = vmul.f32 %v489, %v650
        %v711 = vmul.f32 %v491, %v652
        %v712 = vmul.f32 %v493, %v654
        %v713 = vmul.f32 %v495, %v656
        %v714 = vmul.f32 %v499, %v660
        %v715 = vmul.f32 %v501, %v662
        %v716 = vpack.c.bf16 %v668, %v666
        %v717 = vpack.c.bf16 %v669, %v667
        %v718 = vpack.c.bf16 %v672, %v670
        %v719 = vpack.c.bf16 %v673, %v671
        %v720 = vpack.c.bf16 %v676, %v674
        %v721 = vpack.c.bf16 %v677, %v675
        %v722 = vpack.c.bf16 %v680, %v678
        %v723 = vpack.c.bf16 %v681, %v679
        %v724 = vpack.c.bf16 %v684, %v682
        %v725 = vpack.c.bf16 %v685, %v683
        %v726 = vpack.c.bf16 %v688, %v686
        %v727 = vpack.c.bf16 %v689, %v687
        %v728 = vpack.c.bf16 %v692, %v690
        %v729 = vpack.c.bf16 %v693, %v691
        %v730 = vpack.c.bf16 %v696, %v694
        %v731 = vpack.c.bf16 %v697, %v695
        %v732 = vpack.c.bf16 %v700, %v698
        %v733 = vpack.c.bf16 %v701, %v699
        %v734 = vpack.c.bf16 %v704, %v702
        %v735 = vpack.c.bf16 %v705, %v703
        %v736 = vpack.c.bf16 %v708, %v706
        %v737 = vpack.c.bf16 %v709, %v707
        %v738 = vpack.c.bf16 %v712, %v710
        %v739 = vpack.c.bf16 %v713, %v711
        %v740 = vpack.c.bf16 %v714, %v714
        %v741 = vpack.c.bf16 %v715, %v715
        %v742 = vld [vmem:[%s2] sm:$0xf]
        %v743 = vld [vmem:[%s2 + $0x4] sm:$0xf]
        %v744 = vld [vmem:[%s2 + $0x8] sm:$0xf]
        %v745 = vld [vmem:[%s2 + $0xc] sm:$0xf]
        %v746 = vld [vmem:[%s2 + $0x10] sm:$0xf]
        %v747 = vld [vmem:[%s2 + $0x14] sm:$0xf]
        %v748 = vld [vmem:[%s2 + $0x18] sm:$0xf]
        %v749 = vld [vmem:[%s2 + $0x1c] sm:$0xf]
        %v750 = vld [vmem:[%s2 + $0x20] sm:$0xf]
        %v751 = vld [vmem:[%s2 + $0x24] sm:$0xf]
        %v752 = vld [vmem:[%s2 + $0x28] sm:$0xf]
        %v753 = vld [vmem:[%s2 + $0x2c] sm:$0xf]
        %v754 = vld [vmem:[%s2 + $0x30] sm:$0xf]
        %v755 = vld [vmem:[%s2 + $0x34] sm:$0xf]
        %v756 = vld [vmem:[%s2 + $0x38] sm:$0xf]
        %v757 = vld [vmem:[%s2 + $0x3c] sm:$0xf]
        %v758 = vld [vmem:[%s2 + $0x40] sm:$0xf]
        %v759 = vld [vmem:[%s2 + $0x44] sm:$0xf]
        %v760 = vld [vmem:[%s2 + $0x48] sm:$0xf]
        %v761 = vld [vmem:[%s2 + $0x4c] sm:$0xf]
        %v762 = vld [vmem:[%s2 + $0x50] sm:$0xf]
        %v763 = vld [vmem:[%s2 + $0x54] sm:$0xf]
        %v764 = vld [vmem:[%s2 + $0x58] sm:$0xf]
        %v765 = vld [vmem:[%s2 + $0x5c] sm:$0xf]
        %v766 = vld [vmem:[%s2 + $0x60] sm:$0xf]
        %v767 = vld [vmem:[%s2 + $0x64] sm:$0xf]
        %v768 = vld [vmem:[%s2 + $0x68] sm:$0xf]
        %v769 = vld [vmem:[%s2 + $0x6c] sm:$0xf]
        %v770 = vld [vmem:[%s2 + $0x70] sm:$0xf]
        %v771 = vld [vmem:[%s2 + $0x74] sm:$0xf]
        %v772 = vld [vmem:[%s2 + $0x78] sm:$0xf]
        %v773 = vld [vmem:[%s2 + $0x7c] sm:$0xf]
        %v806 = vunpack.c.l.b16 %v742
        %v807 = vunpack.c.l.b16 %v743
        %v808 = vunpack.c.l.b16 %v744
        %v809 = vunpack.c.l.b16 %v745
        %v810 = vunpack.c.l.b16 %v746
        %v811 = vunpack.c.l.b16 %v747
        %v812 = vunpack.c.l.b16 %v748
        %v813 = vunpack.c.l.b16 %v749
        %v814 = vunpack.c.l.b16 %v750
        %v815 = vunpack.c.l.b16 %v751
        %v816 = vunpack.c.l.b16 %v752
        %v817 = vunpack.c.l.b16 %v753
        %v818 = vunpack.c.l.b16 %v754
        %v819 = vunpack.c.l.b16 %v755
        %v820 = vunpack.c.l.b16 %v756
        %v821 = vunpack.c.l.b16 %v757
        %v822 = vunpack.c.l.b16 %v758
        %v823 = vunpack.c.l.b16 %v759
        %v824 = vunpack.c.l.b16 %v760
        %v825 = vunpack.c.l.b16 %v761
        %v826 = vunpack.c.l.b16 %v762
        %v827 = vunpack.c.l.b16 %v763
        %v828 = vunpack.c.l.b16 %v764
        %v829 = vunpack.c.l.b16 %v765
        %v830 = vunpack.c.l.b16 %v766
        %v831 = vunpack.c.l.b16 %v767
        %v832 = vunpack.c.l.b16 %v768
        %v833 = vunpack.c.l.b16 %v769
        %v834 = vunpack.c.l.b16 %v770
        %v835 = vunpack.c.l.b16 %v771
        %v836 = vunpack.c.l.b16 %v772
        %v837 = vunpack.c.l.b16 %v773
        %v838 = vpack.c.b16 %v807, %v806
        %v839 = vpack.c.b16 %v809, %v808
        %v840 = vpack.c.b16 %v811, %v810
        %v841 = vpack.c.b16 %v813, %v812
        %v842 = vpack.c.b16 %v815, %v814
        %v843 = vpack.c.b16 %v817, %v816
        %v844 = vpack.c.b16 %v819, %v818
        %v845 = vpack.c.b16 %v821, %v820
        %v846 = vpack.c.b16 %v823, %v822
        %v847 = vpack.c.b16 %v825, %v824
        %v848 = vpack.c.b16 %v827, %v826
        %v849 = vpack.c.b16 %v829, %v828
        %v850 = vpack.c.b16 %v831, %v830
        %v851 = vpack.c.b16 %v833, %v832
        %v852 = vpack.c.b16 %v835, %v834
        %v853 = vpack.c.b16 %v837, %v836
        %870 = vmatprep.subr.bf16.mxu0 0
        %871 = vmatpush1.bf16.msra.mxu0 %v838
        %872 = vmatprep.subr.bf16.mxu0 0
        %873 = vmatpush1.bf16.msra.mxu0 %v839
        %874 = vmatprep.subr.bf16.mxu0 0
        %875 = vmatpush1.bf16.msra.mxu0 %v840
        %876 = vmatprep.subr.bf16.mxu0 0
        %877 = vmatpush1.bf16.msra.mxu0 %v841
        %878 = vmatprep.subr.bf16.mxu0 0
        %879 = vmatpush1.bf16.msra.mxu0 %v842
        %880 = vmatprep.subr.bf16.mxu0 0
        %881 = vmatpush1.bf16.msra.mxu0 %v843
        %882 = vmatprep.subr.bf16.mxu0 0
        %883 = vmatpush1.bf16.msra.mxu0 %v844
        %884 = vmatprep.subr.bf16.mxu0 0
        %885 = vmatpush1.bf16.msra.mxu0 %v845
        %886 = vmatprep.subr.bf16.mxu0 0
        %887 = vmatpush1.bf16.msra.mxu0 %v846
        %888 = vmatprep.subr.bf16.mxu0 0
        %889 = vmatpush1.bf16.msra.mxu0 %v847
        %890 = vmatprep.subr.bf16.mxu0 0
        %891 = vmatpush1.bf16.msra.mxu0 %v848
        %892 = vmatprep.subr.bf16.mxu0 0
        %893 = vmatpush1.bf16.msra.mxu0 %v849
        %894 = vmatprep.subr.bf16.mxu0 0
        %895 = vmatpush1.bf16.msra.mxu0 %v850
        %896 = vmatprep.subr.bf16.mxu0 0
        %897 = vmatpush1.bf16.msra.mxu0 %v851
        %898 = vmatprep.subr.bf16.mxu0 0
        %899 = vmatpush1.bf16.msra.mxu0 %v852
        %900 = vmatprep.subr.bf16.mxu0 0
        %901 = vmatpush1.bf16.msra.mxu0 %v853
        %902 = vmatprep.mubr.bf16.mxu0 %v717
        %903 = vmatmul.mubr.bf16.gmra.mrb[0].mxu0 %v716
        %v904 = vpop.f32.mrb[0].mxu0
        %v905 = vadd.f32 0.0, %v904
        %v906 = vpop.f32.mrb[0].mxu0
        %v907 = vpop.f32.mrb[0].mxu0
        %v908 = vadd.f32 0.0, %v907
        %v909 = vpop.f32.mrb[0].mxu0
        %910 = vmatprep.mubr.bf16.mxu0 %v719
        %911 = vmatmul.mubr.bf16.gmra.mrb[0].mxu0 %v718
        %v912 = vpop.f32.mrb[0].mxu0
        %v913 = vadd.f32 0.0, %v912
        %v914 = vpop.f32.mrb[0].mxu0
        %v915 = vpop.f32.mrb[0].mxu0
        %v916 = vadd.f32 0.0, %v915
        %v917 = vpop.f32.mrb[0].mxu0
        %918 = vmatprep.mubr.bf16.mxu0 %v721
        %919 = vmatmul.mubr.bf16.gmra.mrb[0].mxu0 %v720
        %v920 = vpop.f32.mrb[0].mxu0
        %v921 = vadd.f32 0.0, %v920
        %v922 = vpop.f32.mrb[0].mxu0
        %v923 = vpop.f32.mrb[0].mxu0
        %v924 = vadd.f32 0.0, %v923
        %v925 = vpop.f32.mrb[0].mxu0
        %926 = vmatprep.mubr.bf16.mxu0 %v723
        %927 = vmatmul.mubr.bf16.gmra.mrb[0].mxu0 %v722
        %v928 = vpop.f32.mrb[0].mxu0
        %v929 = vadd.f32 0.0, %v928
        %v930 = vpop.f32.mrb[0].mxu0
        %v931 = vpop.f32.mrb[0].mxu0
        %v932 = vadd.f32 0.0, %v931
        %v933 = vpop.f32.mrb[0].mxu0
        %934 = vmatprep.mubr.bf16.mxu0 %v725
        %935 = vmatmul.mubr.bf16.gmra.mrb[0].mxu0 %v724
        %v936 = vpop.f32.mrb[0].mxu0
        %v937 = vadd.f32 0.0, %v936
        %v938 = vpop.f32.mrb[0].mxu0
        %v939 = vpop.f32.mrb[0].mxu0
        %v940 = vadd.f32 0.0, %v939
        %v941 = vpop.f32.mrb[0].mxu0
        %942 = vmatprep.mubr.bf16.mxu0 %v727
        %943 = vmatmul.mubr.bf16.gmra.mrb[0].mxu0 %v726
        %v944 = vpop.f32.mrb[0].mxu0
        %v945 = vadd.f32 0.0, %v944
        %v946 = vpop.f32.mrb[0].mxu0
        %v947 = vpop.f32.mrb[0].mxu0
        %v948 = vadd.f32 0.0, %v947
        %v949 = vpop.f32.mrb[0].mxu0
        %950 = vmatprep.mubr.bf16.mxu0 %v729
        %951 = vmatmul.mubr.bf16.gmra.mrb[0].mxu0 %v728
        %v952 = vpop.f32.mrb[0].mxu0
        %v953 = vadd.f32 0.0, %v952
        %v954 = vpop.f32.mrb[0].mxu0
        %v955 = vpop.f32.mrb[0].mxu0
        %v956 = vadd.f32 0.0, %v955
        %v957 = vpop.f32.mrb[0].mxu0
        %958 = vmatprep.mubr.bf16.mxu0 %v731
        %959 = vmatmul.mubr.bf16.gmra.mrb[0].mxu0 %v730
        %v960 = vpop.f32.mrb[0].mxu0
        %v961 = vadd.f32 0.0, %v960
        %v962 = vpop.f32.mrb[0].mxu0
        %v963 = vpop.f32.mrb[0].mxu0
        %v964 = vadd.f32 0.0, %v963
        %v965 = vpop.f32.mrb[0].mxu0
        %966 = vmatprep.mubr.bf16.mxu0 %v733
        %967 = vmatmul.mubr.bf16.gmra.mrb[0].mxu0 %v732
        %v968 = vpop.f32.mrb[0].mxu0
        %v969 = vadd.f32 0.0, %v968
        %v970 = vpop.f32.mrb[0].mxu0
        %v971 = vpop.f32.mrb[0].mxu0
        %v972 = vadd.f32 0.0, %v971
        %v973 = vpop.f32.mrb[0].mxu0
        %974 = vmatprep.mubr.bf16.mxu0 %v735
        %975 = vmatmul.mubr.bf16.gmra.mrb[0].mxu0 %v734
        %v976 = vpop.f32.mrb[0].mxu0
        %v977 = vadd.f32 0.0, %v976
        %v978 = vpop.f32.mrb[0].mxu0
        %v979 = vpop.f32.mrb[0].mxu0
        %v980 = vadd.f32 0.0, %v979
        %v981 = vpop.f32.mrb[0].mxu0
        %982 = vmatprep.mubr.bf16.mxu0 %v737
        %983 = vmatmul.mubr.bf16.gmra.mrb[0].mxu0 %v736
        %v984 = vpop.f32.mrb[0].mxu0
        %v985 = vadd.f32 0.0, %v984
        %v986 = vpop.f32.mrb[0].mxu0
        %v987 = vpop.f32.mrb[0].mxu0
        %v988 = vadd.f32 0.0, %v987
        %v989 = vpop.f32.mrb[0].mxu0
        %990 = vmatprep.mubr.bf16.mxu0 %v739
        %991 = vmatmul.mubr.bf16.gmra.mrb[0].mxu0 %v738
        %v992 = vpop.f32.mrb[0].mxu0
        %v993 = vadd.f32 0.0, %v992
        %v994 = vpop.f32.mrb[0].mxu0
        %v995 = vpop.f32.mrb[0].mxu0
        %v996 = vadd.f32 0.0, %v995
        %v997 = vpop.f32.mrb[0].mxu0
        %998 = vmatprep.mubr.bf16.mxu0 %v741
        %999 = vmatmul.mubr.bf16.gmra.mrb[0].mxu0 %v740
        %v1000 = vpop.f32.mrb[0].mxu0
        %v1001 = vadd.f32 0.0, %v1000
        %v1002 = vpop.f32.mrb[0].mxu0
        %v1003 = vpop.f32.mrb[0].mxu0
        %v1004 = vpop.f32.mrb[0].mxu0
        %1005 = vdwg.mxu0
        %1006 = vst [vmem:[%s172] sm:$0xff] %v905
        %1007 = vst [vmem:[%s172 + $0x8] sm:$0xff] %v908
        %1008 = vst [vmem:[%s172 + $0x10] sm:$0xff] %v913
        %1009 = vst [vmem:[%s172 + $0x18] sm:$0xff] %v916
        %1010 = vst [vmem:[%s172 + $0x20] sm:$0xff] %v921
        %1011 = vst [vmem:[%s172 + $0x28] sm:$0xff] %v924
        %1012 = vst [vmem:[%s172 + $0x30] sm:$0xff] %v929
        %1013 = vst [vmem:[%s172 + $0x38] sm:$0xff] %v932
        %1014 = vst [vmem:[%s172 + $0x40] sm:$0xff] %v937
        %1015 = vst [vmem:[%s172 + $0x48] sm:$0xff] %v940
        %1016 = vst [vmem:[%s172 + $0x50] sm:$0xff] %v945
        %1017 = vst [vmem:[%s172 + $0x58] sm:$0xff] %v948
        %1018 = vst [vmem:[%s172 + $0x60] sm:$0xff] %v953
        %1019 = vst [vmem:[%s172 + $0x68] sm:$0xff] %v956
        %1020 = vst [vmem:[%s172 + $0x70] sm:$0xff] %v961
        %1021 = vst [vmem:[%s172 + $0x78] sm:$0xff] %v964
        %1022 = vst [vmem:[%s172 + $0x80] sm:$0xff] %v969
        %1023 = vst [vmem:[%s172 + $0x88] sm:$0xff] %v972
        %1024 = vst [vmem:[%s172 + $0x90] sm:$0xff] %v977
        %1025 = vst [vmem:[%s172 + $0x98] sm:$0xff] %v980
        %1026 = vst [vmem:[%s172 + $0xa0] sm:$0xff] %v985
        %1027 = vst [vmem:[%s172 + $0xa8] sm:$0xff] %v988
        %1028 = vst [vmem:[%s172 + $0xb0] sm:$0xff] %v993
        %1029 = vst [vmem:[%s172 + $0xb8] sm:$0xff] %v996
        %1030 = vst [vmem:[%s172 + $0xc0] sm:$0xff] %v1001
        %s1031 = sand.u32 %s90, 1
        %s1032 = sand.u32 %s90, 1
        %s1033 = smul.addr %s1032, 200
        %s1034 = scalar_lea.vmem [#allocation2], %s1033
        // Predicated region
        $region33: #{self_tp_apply.1} parent=31 // pred_check
          %p1035 = pneg %p100
        $region34: #{self_tp_apply.1} parent=31 // pred_check_branch
          %1037 = sbr.rel (%p1035) target = $region36
        $region35: #{self_tp_apply.1} parent=31 // pred_region
          %s1038 = smul.u32 25, %s14
          %s1039 = ssub.s32 98, %s1038
          %p1040 = scmp.lt.s32.totalorder %s1039, 25
          %s1041 = scalar_select %p1040, %s1039, 25
          %s1042 = smul.u32 128, %s1041
          %p1043 = scmp.ne.s32.totalorder 0, %s1042
          %s1044 = smul.addr %s1038, 8
          %s1045 = scalar_lea.vmem %s3, %s1044
          // Predicated region
          $region37: #{self_tp_apply.1} parent=35 // pred_check
            %p1046 = pneg %p1043
          $region38: #{self_tp_apply.1} parent=35 // pred_check_branch
            %1048 = sbr.rel (%p1046) target = $region40
          $region39: #{self_tp_apply.1} parent=35 // pred_region
            // Predicated region
            $region41: #{self_tp_apply.1} parent=39 // pred_check
              _
            $region42: #{self_tp_apply.1} parent=39 // pred_check_branch
              %1050 = sbr.rel (0) target = $region44
            $region43: #{self_tp_apply.1} parent=39 // pred_region
              // Predicated region
              $region63: #{self_tp_apply.1} parent=43 // pred_check
                _
              $region64: #{self_tp_apply.1} parent=43 // pred_check_branch
                %1148 = sbr.rel (0) target = $region66
              $region65: #{self_tp_apply.1} parent=43 // pred_region
                %s1149 = sdiv.u32.pop %s1041, 25
                %s1150 = srem.u32.pop %s1041, 25
                // While loop
                $region67: #{self_tp_apply.1} parent=65 // loop_pre_header
                  _
                $region68: #{self_tp_apply.1} parent=65 // loop_header
                  %s1152 = sphi 0, %s1154
                  %p1153 = scmp.ge.s32.totalorder %s1152, %s1149
                  %s1157 = sphi 0, %s1212
                  %s1158 = sphi %s1034, %s1215
                  %s1159 = sphi %s1045, %s1216
                $region69: #{self_tp_apply.1} parent=65 // loop_header_branch
                  %1156 = sbr.rel (%p1153) target = $region73
                $region70: #{self_tp_apply.1} parent=65 // loop_body
                  %v1160 = vld [vmem:[%s1158] sm:$0xff]
                  %1161 = vst [vmem:[%s1159] sm:$0xff] %v1160
                  %v1162 = vld [vmem:[%s1158 + $0x8] sm:$0xff]
                  %1163 = vst [vmem:[%s1159 + $0x8] sm:$0xff] %v1162
                  %v1164 = vld [vmem:[%s1158 + $0x10] sm:$0xff]
                  %1165 = vst [vmem:[%s1159 + $0x10] sm:$0xff] %v1164
                  %v1166 = vld [vmem:[%s1158 + $0x18] sm:$0xff]
                  %1167 = vst [vmem:[%s1159 + $0x18] sm:$0xff] %v1166
                  %v1168 = vld [vmem:[%s1158 + $0x20] sm:$0xff]
                  %1169 = vst [vmem:[%s1159 + $0x20] sm:$0xff] %v1168
                  %v1170 = vld [vmem:[%s1158 + $0x28] sm:$0xff]
                  %1171 = vst [vmem:[%s1159 + $0x28] sm:$0xff] %v1170
                  %v1172 = vld [vmem:[%s1158 + $0x30] sm:$0xff]
                  %1173 = vst [vmem:[%s1159 + $0x30] sm:$0xff] %v1172
                  %v1174 = vld [vmem:[%s1158 + $0x38] sm:$0xff]
                  %1175 = vst [vmem:[%s1159 + $0x38] sm:$0xff] %v1174
                  %v1176 = vld [vmem:[%s1158 + $0x40] sm:$0xff]
                  %1177 = vst [vmem:[%s1159 + $0x40] sm:$0xff] %v1176
                  %v1178 = vld [vmem:[%s1158 + $0x48] sm:$0xff]
                  %1179 = vst [vmem:[%s1159 + $0x48] sm:$0xff] %v1178
                  %v1180 = vld [vmem:[%s1158 + $0x50] sm:$0xff]
                  %1181 = vst [vmem:[%s1159 + $0x50] sm:$0xff] %v1180
                  %v1182 = vld [vmem:[%s1158 + $0x58] sm:$0xff]
                  %1183 = vst [vmem:[%s1159 + $0x58] sm:$0xff] %v1182
                  %v1184 = vld [vmem:[%s1158 + $0x60] sm:$0xff]
                  %1185 = vst [vmem:[%s1159 + $0x60] sm:$0xff] %v1184
                  %v1186 = vld [vmem:[%s1158 + $0x68] sm:$0xff]
                  %1187 = vst [vmem:[%s1159 + $0x68] sm:$0xff] %v1186
                  %v1188 = vld [vmem:[%s1158 + $0x70] sm:$0xff]
                  %1189 = vst [vmem:[%s1159 + $0x70] sm:$0xff] %v1188
                  %v1190 = vld [vmem:[%s1158 + $0x78] sm:$0xff]
                  %1191 = vst [vmem:[%s1159 + $0x78] sm:$0xff] %v1190
                  %v1192 = vld [vmem:[%s1158 + $0x80] sm:$0xff]
                  %1193 = vst [vmem:[%s1159 + $0x80] sm:$0xff] %v1192
                  %v1194 = vld [vmem:[%s1158 + $0x88] sm:$0xff]
                  %1195 = vst [vmem:[%s1159 + $0x88] sm:$0xff] %v1194
                  %v1196 = vld [vmem:[%s1158 + $0x90] sm:$0xff]
                  %1197 = vst [vmem:[%s1159 + $0x90] sm:$0xff] %v1196
                  %v1198 = vld [vmem:[%s1158 + $0x98] sm:$0xff]
                  %1199 = vst [vmem:[%s1159 + $0x98] sm:$0xff] %v1198
                  %v1200 = vld [vmem:[%s1158 + $0xa0] sm:$0xff]
                  %1201 = vst [vmem:[%s1159 + $0xa0] sm:$0xff] %v1200
                  %v1202 = vld [vmem:[%s1158 + $0xa8] sm:$0xff]
                  %1203 = vst [vmem:[%s1159 + $0xa8] sm:$0xff] %v1202
                  %v1204 = vld [vmem:[%s1158 + $0xb0] sm:$0xff]
                  %1205 = vst [vmem:[%s1159 + $0xb0] sm:$0xff] %v1204
                  %v1206 = vld [vmem:[%s1158 + $0xb8] sm:$0xff]
                  %1207 = vst [vmem:[%s1159 + $0xb8] sm:$0xff] %v1206
                  %v1208 = vld [vmem:[%s1158 + $0xc0] sm:$0xff]
                  %1209 = vst [vmem:[%s1159 + $0xc0] sm:$0xff] %v1208
                  %s1210 = sadd.s32 1, %s1157
                  %p1211 = scmp.ge.s32.totalorder %s1210, %s1149
                  %s1212 = scalar_select %p1211, 0, %s1210
                  %s1213 = smul.u32 %s1212, 200
                  %s1214 = smul.u32 %s1212, 200
                  %s1215 = scalar_lea.vmem %s1034, %s1213 [#allocation2]
                  %s1216 = scalar_lea.vmem %s1045, %s1214
                $region71: #{self_tp_apply.1} parent=65 // loop_footer
                  %s1154 = sadd.s32 %s1152, 1
                $region72: #{self_tp_apply.1} parent=65 // loop_footer_branch
                  %1151 = sbr.rel target = $region68
                $region73: #{self_tp_apply.1} parent=65 // loop_exit
                  _
                %s1217 = sdiv.u32.pop %s1041, 25
                %s1218 = srem.u32.pop %s1041, 25
                %s1219 = smul.u32 %s1217, 25
                %s1220 = smul.u32 8, %s1219
                %s1221 = scalar_lea.vmem %s1034, %s1220 [#allocation2]
                %s1222 = smul.u32 8, %s1219
                %s1223 = scalar_lea.vmem %s1045, %s1222
                // While loop
                $region74: #{self_tp_apply.1} parent=65 // loop_pre_header
                  _
                $region75: #{self_tp_apply.1} parent=65 // loop_header
                  %s1225 = sphi 0, %s1227
                  %p1226 = scmp.ge.s32.totalorder %s1225, %s1218
                  %s1230 = sphi 0, %s1237
                  %s1231 = sphi %s1221, %s1240
                  %s1232 = sphi %s1223, %s1241
                $region76: #{self_tp_apply.1} parent=65 // loop_header_branch
                  %1229 = sbr.rel (%p1226) target = $region80
                $region77: #{self_tp_apply.1} parent=65 // loop_body
                  %v1233 = vld [vmem:[%s1231] sm:$0xff]
                  %1234 = vst [vmem:[%s1232] sm:$0xff] %v1233
                  %s1235 = sadd.s32 1, %s1230
                  %p1236 = scmp.ge.s32.totalorder %s1235, %s1218
                  %s1237 = scalar_select %p1236, 0, %s1235
                  %s1238 = smul.u32 %s1237, 8
                  %s1239 = smul.u32 %s1237, 8
                  %s1240 = scalar_lea.vmem %s1221, %s1238 [#allocation2]
                  %s1241 = scalar_lea.vmem %s1223, %s1239
                $region78: #{self_tp_apply.1} parent=65 // loop_footer
                  %s1227 = sadd.s32 %s1225, 1
                $region79: #{self_tp_apply.1} parent=65 // loop_footer_branch
                  %1224 = sbr.rel target = $region75
                $region80: #{self_tp_apply.1} parent=65 // loop_exit
                  _
              $region66: #{self_tp_apply.1} parent=43 // pred_fallthru
                _
              // Predicated region
              $region81: #{self_tp_apply.1} parent=43 // pred_check
                _
              $region82: #{self_tp_apply.1} parent=43 // pred_check_branch
                %1243 = sbr.rel target = $region84
              $region83: #{self_tp_apply.1} parent=43 // pred_region
                _
              $region84: #{self_tp_apply.1} parent=43 // pred_fallthru
                _
            $region44: #{self_tp_apply.1} parent=39 // pred_fallthru
              _
            // Predicated region
            $region45: #{self_tp_apply.1} parent=39 // pred_check
              _
            $region46: #{self_tp_apply.1} parent=39 // pred_check_branch
              %1052 = sbr.rel target = $region48
            $region47: #{self_tp_apply.1} parent=39 // pred_region
              %s1054 = sdiv.u32.pop %s1041, 25
              %s1055 = srem.u32.pop %s1041, 25
              // While loop
              $region49: #{self_tp_apply.1} parent=47 // loop_pre_header
                _
              $region50: #{self_tp_apply.1} parent=47 // loop_header
                %s1057 = sphi 0, %s1059
                %p1058 = scmp.ge.s32.totalorder %s1057, %s1054
                %s1062 = sphi 0, %s1117
                %s1063 = sphi %s1034, %s1120
                %s1064 = sphi %s1045, %s1121
              $region51: #{self_tp_apply.1} parent=47 // loop_header_branch
                %1061 = sbr.rel (%p1058) target = $region55
              $region52: #{self_tp_apply.1} parent=47 // loop_body
                %v1065 = vld [vmem:[%s1063] sm:$0xff]
                %1066 = vst [vmem:[%s1064] sm:$0xff] %v1065
                %v1067 = vld [vmem:[%s1063 + $0x8] sm:$0xff]
                %1068 = vst [vmem:[%s1064 + $0x8] sm:$0xff] %v1067
                %v1069 = vld [vmem:[%s1063 + $0x10] sm:$0xff]
                %1070 = vst [vmem:[%s1064 + $0x10] sm:$0xff] %v1069
                %v1071 = vld [vmem:[%s1063 + $0x18] sm:$0xff]
                %1072 = vst [vmem:[%s1064 + $0x18] sm:$0xff] %v1071
                %v1073 = vld [vmem:[%s1063 + $0x20] sm:$0xff]
                %1074 = vst [vmem:[%s1064 + $0x20] sm:$0xff] %v1073
                %v1075 = vld [vmem:[%s1063 + $0x28] sm:$0xff]
                %1076 = vst [vmem:[%s1064 + $0x28] sm:$0xff] %v1075
                %v1077 = vld [vmem:[%s1063 + $0x30] sm:$0xff]
                %1078 = vst [vmem:[%s1064 + $0x30] sm:$0xff] %v1077
                %v1079 = vld [vmem:[%s1063 + $0x38] sm:$0xff]
                %1080 = vst [vmem:[%s1064 + $0x38] sm:$0xff] %v1079
                %v1081 = vld [vmem:[%s1063 + $0x40] sm:$0xff]
                %1082 = vst [vmem:[%s1064 + $0x40] sm:$0xff] %v1081
                %v1083 = vld [vmem:[%s1063 + $0x48] sm:$0xff]
                %1084 = vst [vmem:[%s1064 + $0x48] sm:$0xff] %v1083
                %v1085 = vld [vmem:[%s1063 + $0x50] sm:$0xff]
                %1086 = vst [vmem:[%s1064 + $0x50] sm:$0xff] %v1085
                %v1087 = vld [vmem:[%s1063 + $0x58] sm:$0xff]
                %1088 = vst [vmem:[%s1064 + $0x58] sm:$0xff] %v1087
                %v1089 = vld [vmem:[%s1063 + $0x60] sm:$0xff]
                %1090 = vst [vmem:[%s1064 + $0x60] sm:$0xff] %v1089
                %v1091 = vld [vmem:[%s1063 + $0x68] sm:$0xff]
                %1092 = vst [vmem:[%s1064 + $0x68] sm:$0xff] %v1091
                %v1093 = vld [vmem:[%s1063 + $0x70] sm:$0xff]
                %1094 = vst [vmem:[%s1064 + $0x70] sm:$0xff] %v1093
                %v1095 = vld [vmem:[%s1063 + $0x78] sm:$0xff]
                %1096 = vst [vmem:[%s1064 + $0x78] sm:$0xff] %v1095
                %v1097 = vld [vmem:[%s1063 + $0x80] sm:$0xff]
                %1098 = vst [vmem:[%s1064 + $0x80] sm:$0xff] %v1097
                %v1099 = vld [vmem:[%s1063 + $0x88] sm:$0xff]
                %1100 = vst [vmem:[%s1064 + $0x88] sm:$0xff] %v1099
                %v1101 = vld [vmem:[%s1063 + $0x90] sm:$0xff]
                %1102 = vst [vmem:[%s1064 + $0x90] sm:$0xff] %v1101
                %v1103 = vld [vmem:[%s1063 + $0x98] sm:$0xff]
                %1104 = vst [vmem:[%s1064 + $0x98] sm:$0xff] %v1103
                %v1105 = vld [vmem:[%s1063 + $0xa0] sm:$0xff]
                %1106 = vst [vmem:[%s1064 + $0xa0] sm:$0xff] %v1105
                %v1107 = vld [vmem:[%s1063 + $0xa8] sm:$0xff]
                %1108 = vst [vmem:[%s1064 + $0xa8] sm:$0xff] %v1107
                %v1109 = vld [vmem:[%s1063 + $0xb0] sm:$0xff]
                %1110 = vst [vmem:[%s1064 + $0xb0] sm:$0xff] %v1109
                %v1111 = vld [vmem:[%s1063 + $0xb8] sm:$0xff]
                %1112 = vst [vmem:[%s1064 + $0xb8] sm:$0xff] %v1111
                %v1113 = vld [vmem:[%s1063 + $0xc0] sm:$0xff]
                %1114 = vst [vmem:[%s1064 + $0xc0] sm:$0xff] %v1113
                %s1115 = sadd.s32 1, %s1062
                %p1116 = scmp.ge.s32.totalorder %s1115, %s1054
                %s1117 = scalar_select %p1116, 0, %s1115
                %s1118 = smul.u32 %s1117, 200
                %s1119 = smul.u32 %s1117, 200
                %s1120 = scalar_lea.vmem %s1034, %s1118 [#allocation2]
                %s1121 = scalar_lea.vmem %s1045, %s1119
              $region53: #{self_tp_apply.1} parent=47 // loop_footer
                %s1059 = sadd.s32 %s1057, 1
              $region54: #{self_tp_apply.1} parent=47 // loop_footer_branch
                %1056 = sbr.rel target = $region50
              $region55: #{self_tp_apply.1} parent=47 // loop_exit
                _
              %s1122 = sdiv.u32.pop %s1041, 25
              %s1123 = srem.u32.pop %s1041, 25
              %s1124 = smul.u32 %s1122, 25
              %s1125 = smul.u32 8, %s1124
              %s1126 = scalar_lea.vmem %s1034, %s1125 [#allocation2]
              %s1127 = smul.u32 8, %s1124
              %s1128 = scalar_lea.vmem %s1045, %s1127
              // While loop
              $region56: #{self_tp_apply.1} parent=47 // loop_pre_header
                _
              $region57: #{self_tp_apply.1} parent=47 // loop_header
                %s1130 = sphi 0, %s1132
                %p1131 = scmp.ge.s32.totalorder %s1130, %s1123
                %s1135 = sphi 0, %s1142
                %s1136 = sphi %s1126, %s1145
                %s1137 = sphi %s1128, %s1146
              $region58: #{self_tp_apply.1} parent=47 // loop_header_branch
                %1134 = sbr.rel (%p1131) target = $region62
              $region59: #{self_tp_apply.1} parent=47 // loop_body
                %v1138 = vld [vmem:[%s1136] sm:$0xff]
                %1139 = vst [vmem:[%s1137] sm:$0xff] %v1138
                %s1140 = sadd.s32 1, %s1135
                %p1141 = scmp.ge.s32.totalorder %s1140, %s1123
                %s1142 = scalar_select %p1141, 0, %s1140
                %s1143 = smul.u32 %s1142, 8
                %s1144 = smul.u32 %s1142, 8
                %s1145 = scalar_lea.vmem %s1126, %s1143 [#allocation2]
                %s1146 = scalar_lea.vmem %s1128, %s1144
              $region60: #{self_tp_apply.1} parent=47 // loop_footer
                %s1132 = sadd.s32 %s1130, 1
              $region61: #{self_tp_apply.1} parent=47 // loop_footer_branch
                %1129 = sbr.rel target = $region57
              $region62: #{self_tp_apply.1} parent=47 // loop_exit
                _
            $region48: #{self_tp_apply.1} parent=39 // pred_fallthru
              _
          $region40: #{self_tp_apply.1} parent=35 // pred_fallthru
            _
          %1244 = vnop
        $region36: #{self_tp_apply.1} parent=31 // pred_fallthru
          _
      $region32: #{self_tp_apply.1} parent=5 // pred_fallthru
        _
      %p1245 = scmp.le.s32.totalorder 2, %s9
      // Predicated region
      $region85: #{self_tp_apply.1} parent=5 // pred_check
        %p1246 = pneg %p1245
      $region86: #{self_tp_apply.1} parent=5 // pred_check_branch
        %1248 = sbr.rel (%p1246) target = $region88
      $region87: #{self_tp_apply.1} parent=5 // pred_region
        %s1249 = ssub.s32 %s9, 2
        // Predicated region
        $region89: #{self_tp_apply.1} parent=87 // pred_check
          %p1250 = pneg %p106
        $region90: #{self_tp_apply.1} parent=87 // pred_check_branch
          %1252 = sbr.rel (%p1250) target = $region92
        $region91: #{self_tp_apply.1} parent=87 // pred_region
          %s1253 = sand.u32 %s91, 1
          %s1254 = sand.u32 %s91, 1
          %s1255 = smul.addr %s1254, 200
          %s1256 = scalar_lea.vmem [#allocation2], %s1255
        $region92: #{self_tp_apply.1} parent=87 // pred_fallthru
          _
      $region88: #{self_tp_apply.1} parent=5 // pred_fallthru
        _
    $region6: #{self_tp_apply.1} parent=1 // loop_footer
      %s13 = sadd.s32 1, %s9
    $region7: #{self_tp_apply.1} parent=1 // loop_footer_branch
      %8 = sbr.rel target = $region3
    $region8: #{self_tp_apply.1} parent=1 // loop_exit
      _

</llo_original>
